<compile_context>
chip_gen: v6e
topology: v6e:2x2x1
jax: 0.10.0
libtpu: 0.0.40
codegen_flags: <defaults>
</compile_context>

<pallas_src>
import functools

import jax
import jax.numpy as jnp
from jax.experimental import pallas as pl
from jax.experimental.pallas import tpu as pltpu


# ----------------------------------------------------------------------------
# Decoder configuration (matches the PyTorch module under test).
# ----------------------------------------------------------------------------
DECODER_CONVS = [
    dict(in_channels=8, out_channels=8, kernel_size=3, stride=2,
         padding=1, output_padding=1),
    dict(in_channels=8, out_channels=4, kernel_size=5, stride=1,
         padding=2, output_padding=0),
    dict(in_channels=4, out_channels=2, kernel_size=3, stride=2,
         padding=1, output_padding=1),
]


def _cdiv(a, b):
    return -(-a // b)


def _round_up(a, m):
    return _cdiv(a, m) * m


# ----------------------------------------------------------------------------
# Mish.
#   _mish_fast : kernel version. tanh(softplus(x)) folded algebraically to
#                (e^2 + 2e) / (e^2 + 2e + 2) with e = exp(min(x, 20)) -> a
#                single exp + one approx EUP reciprocal.  x > 20 guard keeps
#                PyTorch's softplus-threshold semantics and avoids e^2 overflow.
#   _mish_exact: reference version (exp + log1p + tanh), used only host-side.
# ----------------------------------------------------------------------------
def _mish_fast(x):
    e = jnp.exp(jnp.minimum(x, 20.0))
    num = e * (e + 2.0)
    t = num * pl.reciprocal(num + 2.0, approx=True)
    return jnp.where(x > 20.0, x, x * t)


def _mish_exact(x):
    sp = jnp.where(x > 20.0, x, jnp.log1p(jnp.exp(jnp.minimum(x, 20.0))))
    return x * jnp.tanh(sp)


# ----------------------------------------------------------------------------
# Fused decoder kernel: 3 bf16 MXU matmuls (f32 accumulation) + f32 bias/Mish.
# ----------------------------------------------------------------------------
def _decoder_kernel(x_ref, t1_ref, b1_ref, t2_ref, b2_ref, t3_ref, b3_ref,
                    o_ref):
    h = jnp.dot(x_ref[...], t1_ref[...],
                preferred_element_type=jnp.float32) + b1_ref[...]
    h = _mish_fast(h)
    h = jnp.dot(h.astype(jnp.bfloat16), t2_ref[...],
                preferred_element_type=jnp.float32) + b2_ref[...]
    h = _mish_fast(h)
    h = jnp.dot(h.astype(jnp.bfloat16), t3_ref[...],
                preferred_element_type=jnp.float32) + b3_ref[...]
    o_ref[...] = h.astype(o_ref.dtype)


# ----------------------------------------------------------------------------
# Init-time parameter construction + preprocessing (hoisted out of forward).
# ----------------------------------------------------------------------------
def init_decoder_params(key, convs):
    params = []
    for i, cfg in enumerate(convs):
        kw, kb = jax.random.split(jax.random.fold_in(key, i))
        c_in, c_out, k = cfg["in_channels"], cfg["out_channels"], cfg["kernel_size"]
        fan = c_in * k
        w = jax.random.normal(kw, (c_in, c_out, k), jnp.float32) / jnp.sqrt(fan)
        b = jax.random.normal(kb, (c_out,), jnp.float32) * 0.01
        params.append((w, b))
    return params


def _transfer_matrix(w, L_in, stride, padding, output_padding):
    """Dense (C_in*L_in, C_out*L_out) matrix equivalent to ConvTranspose1d."""
    C_in, C_out, K = w.shape
    L_out = (L_in - 1) * stride - 2 * padding + K + output_padding
    i = jnp.arange(L_in)[:, None]                       # (L_in, 1)
    j = jnp.arange(L_out)[None, :]                      # (1, L_out)
    k = j - i * stride + padding                        # (L_in, L_out) tap index
    valid = (k >= 0) & (k < K)
    k_c = jnp.clip(k, 0, K - 1)
    w_g = w[:, :, k_c]                                  # (C_in, C_out, L_in, L_out)
    t4 = jnp.where(valid[None, None], w_g, 0.0)
    t = jnp.transpose(t4, (0, 2, 1, 3)).reshape(C_in * L_in, C_out * L_out)
    return t, L_out


def prepare_decoder_params(params, convs, L_in):
    """Precompute bf16 transfer matrices + f32 expanded biases once at init."""
    mats = []
    L = L_in
    for (w, b), cfg in zip(params, convs):
        t, L_out = _transfer_matrix(w, L, cfg["stride"], cfg["padding"],
                                    cfg["output_padding"])
        b_e = jnp.repeat(b, L_out).reshape(1, cfg["out_channels"] * L_out)
        mats.append((t.astype(jnp.bfloat16), b_e.astype(jnp.float32)))
        L = L_out
    return dict(mats=mats,
                in_shape=(convs[0]["in_channels"], L_in),
                out_shape=(convs[-1]["out_channels"], L))


# ----------------------------------------------------------------------------
# Row-tile selection: biggest tile <= 1024, batch padded to a tile multiple
# (no partial block), and >= 2 'parallel' blocks for big batches (v7x megacore).
# ----------------------------------------------------------------------------
def _choose_row_tile(N):
    n8 = _round_up(max(N, 1), 8)
    if n8 <= 256:
        tm = n8                       # one block; call overhead dominates anyway
    else:
        tm = min(1024, _round_up(_cdiv(n8, 2), 8))
    n_pad = _round_up(n8, tm)
    return tm, n_pad


# ----------------------------------------------------------------------------
# Forward: one pallas_call for the whole decoder.
# ----------------------------------------------------------------------------
def decoder_forward(prepared, x):
    (t1, b1), (t2, b2), (t3, b3) = prepared["mats"]
    N, C_in, L_in = x.shape
    assert (C_in, L_in) == prepared["in_shape"]
    C_out, L_out = prepared["out_shape"]

    K1, D1 = t1.shape
    K2, D2 = t2.shape
    K3, D3 = t3.shape

    # Contiguous reshape + bf16 cast (halves input DMA, native MXU dtype).
    x2d = x.reshape(N, C_in * L_in).astype(jnp.bfloat16)

    tm, N_pad = _choose_row_tile(N)
    if N_pad != N:
        x2d = jnp.pad(x2d, ((0, N_pad - N), (0, 0)))    # zero rows: defined, NaN-free
    grid = (N_pad // tm,)

    flops = 2 * N_pad * (K1 * D1 + K2 * D2 + K3 * D3)
    transcendentals = 2 * N_pad * (D1 + D2)             # exp + recip per Mish element
    bytes_accessed = (N_pad * K1 * 2 + N_pad * D3 * 4
                      + (t1.size + t2.size + t3.size) * 2
                      + (b1.size + b2.size + b3.size) * 4)

    out2d = pl.pallas_call(
        _decoder_kernel,
        out_shape=jax.ShapeDtypeStruct((N_pad, D3), jnp.float32),
        grid=grid,
        in_specs=[
            pl.BlockSpec((tm, K1), lambda i: (i, 0)),
            pl.BlockSpec((K1, D1), lambda i: (0, 0)),
            pl.BlockSpec((1, D1), lambda i: (0, 0)),
            pl.BlockSpec((K2, D2), lambda i: (0, 0)),
            pl.BlockSpec((1, D2), lambda i: (0, 0)),
            pl.BlockSpec((K3, D3), lambda i: (0, 0)),
            pl.BlockSpec((1, D3), lambda i: (0, 0)),
        ],
        out_specs=pl.BlockSpec((tm, D3), lambda i: (i, 0)),
        compiler_params=pltpu.CompilerParams(
            dimension_semantics=("parallel",)),
        cost_estimate=pl.CostEstimate(flops=flops,
                                      transcendentals=transcendentals,
                                      bytes_accessed=bytes_accessed),
    )(x2d, t1, b1, t2, b2, t3, b3)

    return out2d[:N].reshape(N, C_out, L_out)


# ----------------------------------------------------------------------------
# Pure-JAX references.
#   _decoder_reference          : exact f32 module semantics (independent lowering).
#   _decoder_matched_reference  : same bf16 quantization of x / T / activations
#                                 as the kernel, exact Mish, f32 math -> tight
#                                 check of the kernel structure itself.
# ----------------------------------------------------------------------------
def _conv_transpose1d_ref(x, w, b, *, stride, padding, output_padding):
    N, C_in, L = x.shape
    _, C_out, K = w.shape
    L_up = (L - 1) * stride + 1
    x_up = jnp.zeros((N, C_in, L_up), x.dtype).at[:, :, ::stride].set(x)
    pad_l = K - 1 - padding
    pad_r = K - 1 - padding + output_padding
    x_pad = jnp.pad(x_up, ((0, 0), (0, 0), (pad_l, pad_r)))
    L_out = L_up + pad_l + pad_r - K + 1
    out = jnp.zeros((N, C_out, L_out), jnp.float32) + b[None, :, None]
    for k in range(K):
        out = out + jnp.einsum("ncl,cd->ndl",
                               x_pad[:, :, k:k + L_out], w[:, :, K - 1 - k])
    return out


def _decoder_reference(params, x, convs):
    n_layers = len(convs)
    for i, ((w, b), cfg) in enumerate(zip(params, convs)):
        x = _conv_transpose1d_ref(x, w, b, stride=cfg["stride"],
                                  padding=cfg["padding"],
                                  output_padding=cfg["output_padding"])
        if i < n_layers - 1:
            x = _mish_exact(x)
    return x


def _decoder_matched_reference(prepared, x):
    (t1, b1), (t2, b2), (t3, b3) = prepared["mats"]
    N, C_in, L_in = x.shape
    q = lambda h: h.astype(jnp.bfloat16).astype(jnp.float32)
    h = q(x.reshape(N, C_in * L_in))
    h = _mish_exact(h @ t1.astype(jnp.float32) + b1)
    h = _mish_exact(q(h) @ t2.astype(jnp.float32) + b2)
    h = q(h) @ t3.astype(jnp.float32) + b3
    C_out, L_out = prepared["out_shape"]
    return h.reshape(N, C_out, L_out)


if __name__ == "__main__":
    key = jax.random.PRNGKey(0)
    k_x, k_p = jax.random.split(key)

    batch, c_in, length = 2, DECODER_CONVS[0]["in_channels"], 16
    x = jax.random.normal(k_x, (batch, c_in, length), jnp.float32)

    params = init_decoder_params(k_p, DECODER_CONVS)
    prepared = prepare_decoder_params(params, DECODER_CONVS, length)  # once, at init

    fwd = jax.jit(functools.partial(decoder_forward, prepared))
    y = jax.block_until_ready(fwd(x))

    # (2, 8, 16) -> (2, 8, 32) -> (2, 4, 32) -> (2, 2, 64)
    assert y.shape == (batch, DECODER_CONVS[-1]["out_channels"], 64), y.shape

    y_match = _decoder_matched_reference(prepared, x)   # same bf16 quantization
    y_ref = _decoder_reference(params, x, DECODER_CONVS)  # exact f32 module

    err_match = float(jnp.max(jnp.abs(y - y_match)))
    err_full = float(jnp.max(jnp.abs(y - y_ref)))
    assert err_match < 1e-2, f"kernel vs bf16-matched reference: {err_match}"
    assert err_full < 5e-2, f"kernel vs f32 reference: {err_full}"

    print("KERNEL_OK")
</pallas_src>

<mosaic_0001>
module attributes {stable_mosaic.version = 11 : i64} {
  func.func @_decoder_kernel(%arg0: i32, %arg1: memref<8x128xbf16, #tpu.memory_space<vmem>>, %arg2: memref<128x256xbf16, #tpu.memory_space<vmem>>, %arg3: memref<1x256xf32, #tpu.memory_space<vmem>>, %arg4: memref<256x128xbf16, #tpu.memory_space<vmem>>, %arg5: memref<1x128xf32, #tpu.memory_space<vmem>>, %arg6: memref<128x128xbf16, #tpu.memory_space<vmem>>, %arg7: memref<1x128xf32, #tpu.memory_space<vmem>>, %arg8: memref<8x128xf32, #tpu.memory_space<vmem>>) attributes {dimension_semantics = [#tpu.dimension_semantics<parallel>], iteration_bounds = array<i64: 1>, scalar_prefetch = 0 : i64, scratch_operands = 0 : i64, tpu.core_type = #tpu.core_type<tc>, window_params = [{transform_indices = @transform_0, window_bounds = array<i64: 8, 128>}, {pipeline_mode = #tpu.pipeline_mode<synchronous>, transform_indices = @transform_1, window_bounds = array<i64: 128, 256>}, {pipeline_mode = #tpu.pipeline_mode<synchronous>, transform_indices = @transform_2, window_bounds = array<i64: 1, 256>}, {pipeline_mode = #tpu.pipeline_mode<synchronous>, transform_indices = @transform_3, window_bounds = array<i64: 256, 128>}, {pipeline_mode = #tpu.pipeline_mode<synchronous>, transform_indices = @transform_4, window_bounds = array<i64: 1, 128>}, {pipeline_mode = #tpu.pipeline_mode<synchronous>, transform_indices = @transform_5, window_bounds = array<i64: 128, 128>}, {pipeline_mode = #tpu.pipeline_mode<synchronous>, transform_indices = @transform_6, window_bounds = array<i64: 1, 128>}, {transform_indices = @transform_7, window_bounds = array<i64: 8, 128>}]} {
    %c0 = arith.constant 0 : index
    %c0_0 = arith.constant 0 : index
    %0 = vector.load %arg1[%c0, %c0_0] : memref<8x128xbf16, #tpu.memory_space<vmem>>, vector<8x128xbf16>
    %c0_1 = arith.constant 0 : index
    %c0_2 = arith.constant 0 : index
    %1 = vector.load %arg2[%c0_1, %c0_2] : memref<128x256xbf16, #tpu.memory_space<vmem>>, vector<128x256xbf16>
    %cst = arith.constant dense<0.000000e+00> : vector<8x256xf32>
    %2 = tpu.matmul %0, %1, %cst {dimension_numbers = #tpu.dot_dimension_numbers<[1], [0], [0], [1], [0, 0, 1, 1], [], []>} : vector<8x128xbf16>, vector<128x256xbf16>, vector<8x256xf32> -> vector<8x256xf32>
    %c0_3 = arith.constant 0 : index
    %c0_4 = arith.constant 0 : index
    %3 = vector.load %arg3[%c0_3, %c0_4] : memref<1x256xf32, #tpu.memory_space<vmem>>, vector<1x256xf32>
    %4 = vector.broadcast %3 : vector<1x256xf32> to vector<8x256xf32>
    %5 = arith.addf %2, %4 : vector<8x256xf32>
    %cst_5 = arith.constant 2.000000e+01 : f32
    %6 = vector.broadcast %cst_5 : f32 to vector<8x256xf32>
    %7 = arith.minimumf %5, %6 : vector<8x256xf32>
    %8 = math.exp %7 : vector<8x256xf32>
    %cst_6 = arith.constant 2.000000e+00 : f32
    %9 = vector.broadcast %cst_6 : f32 to vector<8x256xf32>
    %10 = arith.addf %8, %9 : vector<8x256xf32>
    %11 = arith.mulf %8, %10 : vector<8x256xf32>
    %cst_7 = arith.constant 2.000000e+00 : f32
    %12 = vector.broadcast %cst_7 : f32 to vector<8x256xf32>
    %13 = arith.addf %11, %12 : vector<8x256xf32>
    %14 = tpu.reciprocal %13 {approx = true} : vector<8x256xf32> -> vector<8x256xf32>
    %15 = arith.mulf %11, %14 : vector<8x256xf32>
    %cst_8 = arith.constant 2.000000e+01 : f32
    %16 = vector.broadcast %cst_8 : f32 to vector<8x256xf32>
    %17 = arith.cmpf ogt, %5, %16 : vector<8x256xf32>
    %18 = arith.mulf %5, %15 : vector<8x256xf32>
    %19 = arith.select %17, %5, %18 : vector<8x256xi1>, vector<8x256xf32>
    %20 = arith.truncf %19 : vector<8x256xf32> to vector<8x256xbf16>
    %c0_9 = arith.constant 0 : index
    %c0_10 = arith.constant 0 : index
    %21 = vector.load %arg4[%c0_9, %c0_10] : memref<256x128xbf16, #tpu.memory_space<vmem>>, vector<256x128xbf16>
    %cst_11 = arith.constant dense<0.000000e+00> : vector<8x128xf32>
    %22 = tpu.matmul %20, %21, %cst_11 {dimension_numbers = #tpu.dot_dimension_numbers<[1], [0], [0], [1], [0, 0, 1, 1], [], []>} : vector<8x256xbf16>, vector<256x128xbf16>, vector<8x128xf32> -> vector<8x128xf32>
    %c0_12 = arith.constant 0 : index
    %c0_13 = arith.constant 0 : index
    %23 = vector.load %arg5[%c0_12, %c0_13] : memref<1x128xf32, #tpu.memory_space<vmem>>, vector<1x128xf32>
    %24 = vector.broadcast %23 : vector<1x128xf32> to vector<8x128xf32>
    %25 = arith.addf %22, %24 : vector<8x128xf32>
    %cst_14 = arith.constant 2.000000e+01 : f32
    %26 = vector.broadcast %cst_14 : f32 to vector<8x128xf32>
    %27 = arith.minimumf %25, %26 : vector<8x128xf32>
    %28 = math.exp %27 : vector<8x128xf32>
    %cst_15 = arith.constant 2.000000e+00 : f32
    %29 = vector.broadcast %cst_15 : f32 to vector<8x128xf32>
    %30 = arith.addf %28, %29 : vector<8x128xf32>
    %31 = arith.mulf %28, %30 : vector<8x128xf32>
    %cst_16 = arith.constant 2.000000e+00 : f32
    %32 = vector.broadcast %cst_16 : f32 to vector<8x128xf32>
    %33 = arith.addf %31, %32 : vector<8x128xf32>
    %34 = tpu.reciprocal %33 {approx = true} : vector<8x128xf32> -> vector<8x128xf32>
    %35 = arith.mulf %31, %34 : vector<8x128xf32>
    %cst_17 = arith.constant 2.000000e+01 : f32
    %36 = vector.broadcast %cst_17 : f32 to vector<8x128xf32>
    %37 = arith.cmpf ogt, %25, %36 : vector<8x128xf32>
    %38 = arith.mulf %25, %35 : vector<8x128xf32>
    %39 = arith.select %37, %25, %38 : vector<8x128xi1>, vector<8x128xf32>
    %40 = arith.truncf %39 : vector<8x128xf32> to vector<8x128xbf16>
    %c0_18 = arith.constant 0 : index
    %c0_19 = arith.constant 0 : index
    %41 = vector.load %arg6[%c0_18, %c0_19] : memref<128x128xbf16, #tpu.memory_space<vmem>>, vector<128x128xbf16>
    %cst_20 = arith.constant dense<0.000000e+00> : vector<8x128xf32>
    %42 = tpu.matmul %40, %41, %cst_20 {dimension_numbers = #tpu.dot_dimension_numbers<[1], [0], [0], [1], [0, 0, 1, 1], [], []>} : vector<8x128xbf16>, vector<128x128xbf16>, vector<8x128xf32> -> vector<8x128xf32>
    %c0_21 = arith.constant 0 : index
    %c0_22 = arith.constant 0 : index
    %43 = vector.load %arg7[%c0_21, %c0_22] : memref<1x128xf32, #tpu.memory_space<vmem>>, vector<1x128xf32>
    %44 = vector.broadcast %43 : vector<1x128xf32> to vector<8x128xf32>
    %45 = arith.addf %42, %44 : vector<8x128xf32>
    %c0_23 = arith.constant 0 : index
    %c0_24 = arith.constant 0 : index
    %46 = vector.load %arg8[%c0_23, %c0_24] : memref<8x128xf32, #tpu.memory_space<vmem>>, vector<8x128xf32>
    tpu.vector_store %arg8[%c0_23, %c0_24], %45 {strides = array<i32>} : memref<8x128xf32, #tpu.memory_space<vmem>>, vector<8x128xf32>,
    return
  }
  func.func @transform_0(%arg0: i32) -> (i32, i32) {
    %c0_i32 = arith.constant 0 : i32
    %c0_i32_0 = arith.constant 0 : i32
    return %arg0, %c0_i32 : i32, i32
  }
  func.func @transform_1(%arg0: i32) -> (i32, i32) {
    %c0_i32 = arith.constant 0 : i32
    %c0_i32_0 = arith.constant 0 : i32
    %c0_i32_1 = arith.constant 0 : i32
    return %c0_i32, %c0_i32_0 : i32, i32
  }
  func.func @transform_2(%arg0: i32) -> (i32, i32) {
    %c0_i32 = arith.constant 0 : i32
    %c0_i32_0 = arith.constant 0 : i32
    %c0_i32_1 = arith.constant 0 : i32
    return %c0_i32, %c0_i32_0 : i32, i32
  }
  func.func @transform_3(%arg0: i32) -> (i32, i32) {
    %c0_i32 = arith.constant 0 : i32
    %c0_i32_0 = arith.constant 0 : i32
    %c0_i32_1 = arith.constant 0 : i32
    return %c0_i32, %c0_i32_0 : i32, i32
  }
  func.func @transform_4(%arg0: i32) -> (i32, i32) {
    %c0_i32 = arith.constant 0 : i32
    %c0_i32_0 = arith.constant 0 : i32
    %c0_i32_1 = arith.constant 0 : i32
    return %c0_i32, %c0_i32_0 : i32, i32
  }
  func.func @transform_5(%arg0: i32) -> (i32, i32) {
    %c0_i32 = arith.constant 0 : i32
    %c0_i32_0 = arith.constant 0 : i32
    %c0_i32_1 = arith.constant 0 : i32
    return %c0_i32, %c0_i32_0 : i32, i32
  }
  func.func @transform_6(%arg0: i32) -> (i32, i32) {
    %c0_i32 = arith.constant 0 : i32
    %c0_i32_0 = arith.constant 0 : i32
    %c0_i32_1 = arith.constant 0 : i32
    return %c0_i32, %c0_i32_0 : i32, i32
  }
  func.func @transform_7(%arg0: i32) -> (i32, i32) {
    %c0_i32 = arith.constant 0 : i32
    %c0_i32_0 = arith.constant 0 : i32
    return %arg0, %c0_i32 : i32, i32
  }
}

</mosaic_0001>

<llo_original>
// kernel: decoder_forward.1
$region0: #{decoder_forward.1}
  #allocation0 [shape = 'u32[]', space=smem, size = 0x4, offset = 0x4, fixed_abs, tag = 'smem constant byte address 0x4 - core index']
  #allocation1 [shape = 'u32[144,128]{1,0:T(1,128)}', space=vmem, size = 0x12000, scoped, tag = 'internal scratch']
  %s0 = inlined_call_operand.vmem [shape: bf16[8,128], index: 0, kind: input, shape index: {}]
  %s1 = inlined_call_operand.hbm [shape: bf16[128,256], index: 1, kind: input, shape index: {}]
  %s2 = inlined_call_operand.vmem [shape: f32[1,256], index: 2, kind: input, shape index: {}]
  %s3 = inlined_call_operand.hbm [shape: bf16[256,128], index: 3, kind: input, shape index: {}]
  %s4 = inlined_call_operand.vmem [shape: f32[1,128], index: 4, kind: input, shape index: {}]
  %s5 = inlined_call_operand.hbm [shape: bf16[128,128], index: 5, kind: input, shape index: {}]
  %s6 = inlined_call_operand.vmem [shape: f32[1,128], index: 6, kind: input, shape index: {}]
  %s7 = inlined_call_operand.vmem [shape: f32[8,128], index: 7, kind: output, shape index: {}]
  %s8 = sld [smem:[#allocation0]]
  $region50: #{decoder_forward.1} parent=0
    _
  %s10 = ssub.s32 1, %s8
  %s11 = scalar_select 0, %s10, %s8
  $region1: #{decoder_forward.1} parent=0
    #allocation2 [shape = 'u8[65536]{0}', space=vmem, size = 0x10000, scoped, tag = 'input window, operand 1, single buffered']
    #allocation3 [shape = 's32[1]{0}', space=sflag, size = 0x4, scoped, tag = 'scoped memory for decoder_forward.1']
    #allocation4 [shape = 'u8[65536]{0}', space=vmem, size = 0x10000, scoped, tag = 'input window, operand 3, single buffered']
    #allocation5 [shape = 's32[1]{0}', space=sflag, size = 0x4, scoped, tag = 'scoped memory for decoder_forward.1']
    #allocation6 [shape = 'u8[32768]{0}', space=vmem, size = 0x8000, scoped, tag = 'input window, operand 5, single buffered']
    %12 = vsyncpa [#allocation3], 0
    %13 = vsyncpa [#allocation5], 0
    // Predicated region
    $region2: #{decoder_forward.1} parent=1 // pred_check
      _
    $region3: #{decoder_forward.1} parent=1 // pred_check_branch
      %15 = sbr.rel (0) target = $region5
    $region4: #{decoder_forward.1} parent=1 // pred_region
      _
    $region5: #{decoder_forward.1} parent=1 // pred_fallthru
      _
    // Predicated region
    $region6: #{decoder_forward.1} parent=1 // pred_check
      _
    $region7: #{decoder_forward.1} parent=1 // pred_check_branch
      %17 = sbr.rel (0) target = $region9
    $region8: #{decoder_forward.1} parent=1 // pred_region
      %s19 = ssub.s32 2048, 2048
      %20 = vsyncadd [#allocation3], %s19
      %s21 = sshll.u32 [#allocation2], 4
      %s22 = int_to_ptr.vmem [resolvable:$true] %s21
      %27 = dma.hbm_to_vmem [thread:$0]  %s1, 2048, %s22, [#allocation3], 128, 128, 8
    $region9: #{decoder_forward.1} parent=1 // pred_fallthru
      _
    // Predicated region
    $region10: #{decoder_forward.1} parent=1 // pred_check
      _
    $region11: #{decoder_forward.1} parent=1 // pred_check_branch
      %29 = sbr.rel (0) target = $region13
    $region12: #{decoder_forward.1} parent=1 // pred_region
      _
    $region13: #{decoder_forward.1} parent=1 // pred_fallthru
      _
    // Predicated region
    $region14: #{decoder_forward.1} parent=1 // pred_check
      _
    $region15: #{decoder_forward.1} parent=1 // pred_check_branch
      %31 = sbr.rel (0) target = $region17
    $region16: #{decoder_forward.1} parent=1 // pred_region
      %s33 = ssub.s32 2048, 2048
      %34 = vsyncadd [#allocation5], %s33
      %s35 = sshll.u32 [#allocation4], 4
      %s36 = int_to_ptr.vmem [resolvable:$true] %s35
      %41 = dma.hbm_to_vmem [thread:$0]  %s3, 2048, %s36, [#allocation5], 64, 64, 4
    $region17: #{decoder_forward.1} parent=1 // pred_fallthru
      _
    // Predicated region
    $region18: #{decoder_forward.1} parent=1 // pred_check
      _
    $region19: #{decoder_forward.1} parent=1 // pred_check_branch
      %43 = sbr.rel (0) target = $region21
    $region20: #{decoder_forward.1} parent=1 // pred_region
      _
    $region21: #{decoder_forward.1} parent=1 // pred_fallthru
      _
    // Predicated region
    $region22: #{decoder_forward.1} parent=1 // pred_check
      _
    $region23: #{decoder_forward.1} parent=1 // pred_check_branch
      %45 = sbr.rel (0) target = $region25
    $region24: #{decoder_forward.1} parent=1 // pred_region
      %s47 = ssub.s32 1024, 1024
      %48 = vsyncadd [#allocation5], %s47
      %s49 = sshll.u32 [#allocation6], 4
      %s50 = int_to_ptr.vmem [resolvable:$true] %s49
      %55 = dma.hbm_to_vmem [thread:$0]  %s5, 1024, %s50, [#allocation5], 64, 64, 4
    $region25: #{decoder_forward.1} parent=1 // pred_fallthru
      _
    // Predicated region
    $region26: #{decoder_forward.1} parent=1 // pred_check
      _
    $region27: #{decoder_forward.1} parent=1 // pred_check_branch
      %57 = sbr.rel (0) target = $region29
    $region28: #{decoder_forward.1} parent=1 // pred_region
      _
    $region29: #{decoder_forward.1} parent=1 // pred_fallthru
      _
    // Predicated region
    $region30: #{decoder_forward.1} parent=1 // pred_check
      _
    $region31: #{decoder_forward.1} parent=1 // pred_check_branch
      %59 = sbr.rel (0) target = $region33
    $region32: #{decoder_forward.1} parent=1 // pred_region
      %60 = dma.done [#allocation3], 2048
    $region33: #{decoder_forward.1} parent=1 // pred_fallthru
      _
    // Predicated region
    $region34: #{decoder_forward.1} parent=1 // pred_check
      _
    $region35: #{decoder_forward.1} parent=1 // pred_check_branch
      %62 = sbr.rel (0) target = $region37
    $region36: #{decoder_forward.1} parent=1 // pred_region
      %63 = dma.done [#allocation5], 2048
    $region37: #{decoder_forward.1} parent=1 // pred_fallthru
      _
    // Predicated region
    $region38: #{decoder_forward.1} parent=1 // pred_check
      _
    $region39: #{decoder_forward.1} parent=1 // pred_check_branch
      %65 = sbr.rel (0) target = $region41
    $region40: #{decoder_forward.1} parent=1 // pred_region
      %66 = dma.done [#allocation5], 1024
    $region41: #{decoder_forward.1} parent=1 // pred_fallthru
      _
    %v68 = vld [vmem:[%s0] sm:$0xf]
    %v69 = vld [vmem:[#allocation2] sm:$0xff]
    %v70 = vld [vmem:[#allocation2 + $0x8] sm:$0xff]
    %v71 = vld [vmem:[#allocation2 + $0x10] sm:$0xff]
    %v72 = vld [vmem:[#allocation2 + $0x18] sm:$0xff]
    %v73 = vld [vmem:[#allocation2 + $0x20] sm:$0xff]
    %v74 = vld [vmem:[#allocation2 + $0x28] sm:$0xff]
    %v75 = vld [vmem:[#allocation2 + $0x30] sm:$0xff]
    %v76 = vld [vmem:[#allocation2 + $0x38] sm:$0xff]
    %v77 = vld [vmem:[#allocation2 + $0x40] sm:$0xff]
    %v78 = vld [vmem:[#allocation2 + $0x48] sm:$0xff]
    %v79 = vld [vmem:[#allocation2 + $0x50] sm:$0xff]
    %v80 = vld [vmem:[#allocation2 + $0x58] sm:$0xff]
    %v81 = vld [vmem:[#allocation2 + $0x60] sm:$0xff]
    %v82 = vld [vmem:[#allocation2 + $0x68] sm:$0xff]
    %v83 = vld [vmem:[#allocation2 + $0x70] sm:$0xff]
    %v84 = vld [vmem:[#allocation2 + $0x78] sm:$0xff]
    %v85 = vld [vmem:[%s2] sm:$0x3]
    %v87 = vlaneseq
    %v88 = vshrl.u32 %v87, 7
    %v89 = vsub.s32 0, %v88
    %v90 = vrot.slane %v85, %v89
    %v91 = vlaneseq
    %v92 = vshrl.u32 %v91, 7
    %v93 = vsub.s32 1, %v92
    %v94 = vrot.slane %v85, %v93
    %v113 = vunpack.c.l.b16 %v69
    %v114 = vunpack.c.h.b16 %v69
    %v115 = vunpack.c.l.b16 %v70
    %v116 = vunpack.c.h.b16 %v70
    %v117 = vunpack.c.l.b16 %v71
    %v118 = vunpack.c.h.b16 %v71
    %v119 = vunpack.c.l.b16 %v72
    %v120 = vunpack.c.h.b16 %v72
    %v121 = vunpack.c.l.b16 %v73
    %v122 = vunpack.c.h.b16 %v73
    %v123 = vunpack.c.l.b16 %v74
    %v124 = vunpack.c.h.b16 %v74
    %v125 = vunpack.c.l.b16 %v75
    %v126 = vunpack.c.h.b16 %v75
    %v127 = vunpack.c.l.b16 %v76
    %v128 = vunpack.c.h.b16 %v76
    %v129 = vunpack.c.l.b16 %v77
    %v130 = vunpack.c.h.b16 %v77
    %v131 = vunpack.c.l.b16 %v78
    %v132 = vunpack.c.h.b16 %v78
    %v133 = vunpack.c.l.b16 %v79
    %v134 = vunpack.c.h.b16 %v79
    %v135 = vunpack.c.l.b16 %v80
    %v136 = vunpack.c.h.b16 %v80
    %v137 = vunpack.c.l.b16 %v81
    %v138 = vunpack.c.h.b16 %v81
    %v139 = vunpack.c.l.b16 %v82
    %v140 = vunpack.c.h.b16 %v82
    %v141 = vunpack.c.l.b16 %v83
    %v142 = vunpack.c.h.b16 %v83
    %v143 = vunpack.c.l.b16 %v84
    %v144 = vunpack.c.h.b16 %v84
    %v145 = vpack.c.b16 %v115, %v113
    %v146 = vpack.c.b16 %v116, %v114
    %v147 = vpack.c.b16 %v119, %v117
    %v148 = vpack.c.b16 %v120, %v118
    %v149 = vpack.c.b16 %v123, %v121
    %v150 = vpack.c.b16 %v124, %v122
    %v151 = vpack.c.b16 %v127, %v125
    %v152 = vpack.c.b16 %v128, %v126
    %v153 = vpack.c.b16 %v131, %v129
    %v154 = vpack.c.b16 %v132, %v130
    %v155 = vpack.c.b16 %v135, %v133
    %v156 = vpack.c.b16 %v136, %v134
    %v157 = vpack.c.b16 %v139, %v137
    %v158 = vpack.c.b16 %v140, %v138
    %v159 = vpack.c.b16 %v143, %v141
    %v160 = vpack.c.b16 %v144, %v142
    %177 = vmatprep.subr.bf16.mxu0 %v160
    %178 = vmatpush1.bf16.msra.mxu0 %v159
    %179 = vmatprep.subr.bf16.mxu0 %v158
    %180 = vmatpush1.bf16.msra.mxu0 %v157
    %181 = vmatprep.subr.bf16.mxu0 %v156
    %182 = vmatpush1.bf16.msra.mxu0 %v155
    %183 = vmatprep.subr.bf16.mxu0 %v154
    %184 = vmatpush1.bf16.msra.mxu0 %v153
    %185 = vmatprep.subr.bf16.mxu0 %v152
    %186 = vmatpush1.bf16.msra.mxu0 %v151
    %187 = vmatprep.subr.bf16.mxu0 %v150
    %188 = vmatpush1.bf16.msra.mxu0 %v149
    %189 = vmatprep.subr.bf16.mxu0 %v148
    %190 = vmatpush1.bf16.msra.mxu0 %v147
    %191 = vmatprep.subr.bf16.mxu0 %v146
    %192 = vmatpush1.bf16.msra.mxu0 %v145
    %193 = vmatprep.subr.bf16.mxu0 0
    %194 = vmatpush2.bf16.msra.mxu0 0
    %195 = vmatprep.subr.bf16.mxu0 0
    %196 = vmatpush2.bf16.msra.mxu0 0
    %197 = vmatprep.subr.bf16.mxu0 0
    %198 = vmatpush2.bf16.msra.mxu0 0
    %199 = vmatprep.subr.bf16.mxu0 0
    %200 = vmatpush2.bf16.msra.mxu0 0
    %201 = vmatprep.subr.bf16.mxu0 0
    %202 = vmatpush2.bf16.msra.mxu0 0
    %203 = vmatprep.subr.bf16.mxu0 0
    %204 = vmatpush2.bf16.msra.mxu0 0
    %205 = vmatprep.subr.bf16.mxu0 0
    %206 = vmatpush2.bf16.msra.mxu0 0
    %207 = vmatprep.subr.bf16.mxu0 0
    %208 = vmatpush2.bf16.msra.mxu0 0
    %209 = vmatprep.mubr.bf16.mxu0 0
    %210 = vmatmul.mubr.bf16.gmra.mxu0 %v68
    %v211 = vpop.f32.mrf.mxu0
    %v212 = vadd.f32 %v90, %v211
    %v213 = vpop.f32.mrf.mxu0
    %v214 = vadd.f32 %v94, %v213
    %v215 = vpop.f32.mrf.mxu0
    %v216 = vpop.f32.mrf.mxu0
    %217 = vdwg.mxu0
    %v218 = vmin.f32 %v212, 20.0
    %v219 = vmin.f32 %v214, 20.0
    %v220 = vmul.f32 %v218, 1.442695
    %v221 = vpow.pop %v220
    %v222 = vmul.f32 %v219, 1.442695
    %v223 = vpow.pop %v222
    %v224 = vadd.f32 %v221, 2.0
    %v225 = vadd.f32 %v223, 2.0
    %v226 = vmul.f32 %v221, %v224
    %v227 = vmul.f32 %v223, %v225
    %v228 = vadd.f32 %v226, 2.0
    %v229 = vadd.f32 %v227, 2.0
    %v230 = vrcp.pop %v228
    %v231 = vrcp.pop %v229
    %v232 = vmul.f32 %v226, %v230
    %v233 = vmul.f32 %v227, %v231
    %vm234 = vcmp.gt.f32.partialorder %v212, 20.0
    %vm235 = vcmp.gt.f32.partialorder %v214, 20.0
    %v236 = vmul.f32 %v212, %v232
    %v237 = vmul.f32 %v214, %v233
    %v238 = vsel %vm234, %v212, %v236
    %v239 = vsel %vm235, %v214, %v237
    %v240 = vpack.c.bf16 %v238, %v238
    %v241 = vpack.c.bf16 %v239, %v239
    %v242 = vld [vmem:[#allocation4] sm:$0xf]
    %v243 = vld [vmem:[#allocation4 + $0x4] sm:$0xf]
    %v244 = vld [vmem:[#allocation4 + $0x8] sm:$0xf]
    %v245 = vld [vmem:[#allocation4 + $0xc] sm:$0xf]
    %v246 = vld [vmem:[#allocation4 + $0x10] sm:$0xf]
    %v247 = vld [vmem:[#allocation4 + $0x14] sm:$0xf]
    %v248 = vld [vmem:[#allocation4 + $0x18] sm:$0xf]
    %v249 = vld [vmem:[#allocation4 + $0x1c] sm:$0xf]
    %v250 = vld [vmem:[#allocation4 + $0x20] sm:$0xf]
    %v251 = vld [vmem:[#allocation4 + $0x24] sm:$0xf]
    %v252 = vld [vmem:[#allocation4 + $0x28] sm:$0xf]
    %v253 = vld [vmem:[#allocation4 + $0x2c] sm:$0xf]
    %v254 = vld [vmem:[#allocation4 + $0x30] sm:$0xf]
    %v255 = vld [vmem:[#allocation4 + $0x34] sm:$0xf]
    %v256 = vld [vmem:[#allocation4 + $0x38] sm:$0xf]
    %v257 = vld [vmem:[#allocation4 + $0x3c] sm:$0xf]
    %v258 = vld [vmem:[#allocation4 + $0x40] sm:$0xf]
    %v259 = vld [vmem:[#allocation4 + $0x44] sm:$0xf]
    %v260 = vld [vmem:[#allocation4 + $0x48] sm:$0xf]
    %v261 = vld [vmem:[#allocation4 + $0x4c] sm:$0xf]
    %v262 = vld [vmem:[#allocation4 + $0x50] sm:$0xf]
    %v263 = vld [vmem:[#allocation4 + $0x54] sm:$0xf]
    %v264 = vld [vmem:[#allocation4 + $0x58] sm:$0xf]
    %v265 = vld [vmem:[#allocation4 + $0x5c] sm:$0xf]
    %v266 = vld [vmem:[#allocation4 + $0x60] sm:$0xf]
    %v267 = vld [vmem:[#allocation4 + $0x64] sm:$0xf]
    %v268 = vld [vmem:[#allocation4 + $0x68] sm:$0xf]
    %v269 = vld [vmem:[#allocation4 + $0x6c] sm:$0xf]
    %v270 = vld [vmem:[#allocation4 + $0x70] sm:$0xf]
    %v271 = vld [vmem:[#allocation4 + $0x74] sm:$0xf]
    %v272 = vld [vmem:[#allocation4 + $0x78] sm:$0xf]
    %v273 = vld [vmem:[#allocation4 + $0x7c] sm:$0xf]
    %v274 = vld [vmem:[%s4] sm:$0x1]
    %v276 = vlaneseq
    %v277 = vshrl.u32 %v276, 7
    %v278 = vsub.s32 0, %v277
    %v279 = vrot.slane %v274, %v278
    %v313 = vunpack.c.l.b16 %v242
    %v314 = vunpack.c.l.b16 %v243
    %v315 = vunpack.c.l.b16 %v244
    %v316 = vunpack.c.l.b16 %v245
    %v317 = vunpack.c.l.b16 %v246
    %v318 = vunpack.c.l.b16 %v247
    %v319 = vunpack.c.l.b16 %v248
    %v320 = vunpack.c.l.b16 %v249
    %v321 = vunpack.c.l.b16 %v250
    %v322 = vunpack.c.l.b16 %v251
    %v323 = vunpack.c.l.b16 %v252
    %v324 = vunpack.c.l.b16 %v253
    %v325 = vunpack.c.l.b16 %v254
    %v326 = vunpack.c.l.b16 %v255
    %v327 = vunpack.c.l.b16 %v256
    %v328 = vunpack.c.l.b16 %v257
    %v329 = vunpack.c.l.b16 %v258
    %v330 = vunpack.c.l.b16 %v259
    %v331 = vunpack.c.l.b16 %v260
    %v332 = vunpack.c.l.b16 %v261
    %v333 = vunpack.c.l.b16 %v262
    %v334 = vunpack.c.l.b16 %v263
    %v335 = vunpack.c.l.b16 %v264
    %v336 = vunpack.c.l.b16 %v265
    %v337 = vunpack.c.l.b16 %v266
    %v338 = vunpack.c.l.b16 %v267
    %v339 = vunpack.c.l.b16 %v268
    %v340 = vunpack.c.l.b16 %v269
    %v341 = vunpack.c.l.b16 %v270
    %v342 = vunpack.c.l.b16 %v271
    %v343 = vunpack.c.l.b16 %v272
    %v344 = vunpack.c.l.b16 %v273
    %v345 = vpack.c.b16 %v314, %v313
    %v346 = vpack.c.b16 %v316, %v315
    %v347 = vpack.c.b16 %v318, %v317
    %v348 = vpack.c.b16 %v320, %v319
    %v349 = vpack.c.b16 %v322, %v321
    %v350 = vpack.c.b16 %v324, %v323
    %v351 = vpack.c.b16 %v326, %v325
    %v352 = vpack.c.b16 %v328, %v327
    %v353 = vpack.c.b16 %v330, %v329
    %v354 = vpack.c.b16 %v332, %v331
    %v355 = vpack.c.b16 %v334, %v333
    %v356 = vpack.c.b16 %v336, %v335
    %v357 = vpack.c.b16 %v338, %v337
    %v358 = vpack.c.b16 %v340, %v339
    %v359 = vpack.c.b16 %v342, %v341
    %v360 = vpack.c.b16 %v344, %v343
    %377 = vmatprep.subr.bf16.mxu0 0
    %378 = vmatpush1.bf16.msra.mxu0 %v352
    %379 = vmatprep.subr.bf16.mxu0 0
    %380 = vmatpush1.bf16.msra.mxu0 %v351
    %381 = vmatprep.subr.bf16.mxu0 0
    %382 = vmatpush1.bf16.msra.mxu0 %v350
    %383 = vmatprep.subr.bf16.mxu0 0
    %384 = vmatpush1.bf16.msra.mxu0 %v349
    %385 = vmatprep.subr.bf16.mxu0 0
    %386 = vmatpush1.bf16.msra.mxu0 %v348
    %387 = vmatprep.subr.bf16.mxu0 0
    %388 = vmatpush1.bf16.msra.mxu0 %v347
    %389 = vmatprep.subr.bf16.mxu0 0
    %390 = vmatpush1.bf16.msra.mxu0 %v346
    %391 = vmatprep.subr.bf16.mxu0 0
    %392 = vmatpush1.bf16.msra.mxu0 %v345
    %393 = vmatprep.subr.bf16.mxu0 0
    %394 = vmatpush2.bf16.msra.mxu0 %v360
    %395 = vmatprep.subr.bf16.mxu0 0
    %396 = vmatpush2.bf16.msra.mxu0 %v359
    %397 = vmatprep.subr.bf16.mxu0 0
    %398 = vmatpush2.bf16.msra.mxu0 %v358
    %399 = vmatprep.subr.bf16.mxu0 0
    %400 = vmatpush2.bf16.msra.mxu0 %v357
    %401 = vmatprep.subr.bf16.mxu0 0
    %402 = vmatpush2.bf16.msra.mxu0 %v356
    %403 = vmatprep.subr.bf16.mxu0 0
    %404 = vmatpush2.bf16.msra.mxu0 %v355
    %405 = vmatprep.subr.bf16.mxu0 0
    %406 = vmatpush2.bf16.msra.mxu0 %v354
    %407 = vmatprep.subr.bf16.mxu0 0
    %408 = vmatpush2.bf16.msra.mxu0 %v353
    %409 = vmatprep.mubr.bf16.mxu0 %v241
    %410 = vmatmul.mubr.bf16.gmra.mxu0 %v240
    %v411 = vpop.f32.mrf.mxu0
    %v412 = vadd.f32 %v279, %v411
    %v413 = vpop.f32.mrf.mxu0
    %v414 = vpop.f32.mrf.mxu0
    %v415 = vpop.f32.mrf.mxu0
    %416 = vdwg.mxu0
    %v417 = vmin.f32 %v412, 20.0
    %v418 = vmul.f32 %v417, 1.442695
    %v419 = vpow.pop %v418
    %v420 = vadd.f32 %v419, 2.0
    %v421 = vmul.f32 %v419, %v420
    %v422 = vadd.f32 %v421, 2.0
    %v423 = vrcp.pop %v422
    %v424 = vmul.f32 %v421, %v423
    %vm425 = vcmp.gt.f32.partialorder %v412, 20.0
    %v426 = vmul.f32 %v412, %v424
    %v427 = vsel %vm425, %v412, %v426
    %v428 = vpack.c.bf16 %v427, %v427
    %v429 = vld [vmem:[#allocation6] sm:$0xf]
    %v430 = vld [vmem:[#allocation6 + $0x4] sm:$0xf]
    %v431 = vld [vmem:[#allocation6 + $0x8] sm:$0xf]
    %v432 = vld [vmem:[#allocation6 + $0xc] sm:$0xf]
    %v433 = vld [vmem:[#allocation6 + $0x10] sm:$0xf]
    %v434 = vld [vmem:[#allocation6 + $0x14] sm:$0xf]
    %v435 = vld [vmem:[#allocation6 + $0x18] sm:$0xf]
    %v436 = vld [vmem:[#allocation6 + $0x1c] sm:$0xf]
    %v437 = vld [vmem:[#allocation6 + $0x20] sm:$0xf]
    %v438 = vld [vmem:[#allocation6 + $0x24] sm:$0xf]
    %v439 = vld [vmem:[#allocation6 + $0x28] sm:$0xf]
    %v440 = vld [vmem:[#allocation6 + $0x2c] sm:$0xf]
    %v441 = vld [vmem:[#allocation6 + $0x30] sm:$0xf]
    %v442 = vld [vmem:[#allocation6 + $0x34] sm:$0xf]
    %v443 = vld [vmem:[#allocation6 + $0x38] sm:$0xf]
    %v444 = vld [vmem:[#allocation6 + $0x3c] sm:$0xf]
    %v445 = vld [vmem:[%s6] sm:$0x1]
    %v447 = vlaneseq
    %v448 = vshrl.u32 %v447, 7
    %v449 = vsub.s32 0, %v448
    %v450 = vrot.slane %v445, %v449
    %v468 = vunpack.c.l.b16 %v429
    %v469 = vunpack.c.l.b16 %v430
    %v470 = vunpack.c.l.b16 %v431
    %v471 = vunpack.c.l.b16 %v432
    %v472 = vunpack.c.l.b16 %v433
    %v473 = vunpack.c.l.b16 %v434
    %v474 = vunpack.c.l.b16 %v435
    %v475 = vunpack.c.l.b16 %v436
    %v476 = vunpack.c.l.b16 %v437
    %v477 = vunpack.c.l.b16 %v438
    %v478 = vunpack.c.l.b16 %v439
    %v479 = vunpack.c.l.b16 %v440
    %v480 = vunpack.c.l.b16 %v441
    %v481 = vunpack.c.l.b16 %v442
    %v482 = vunpack.c.l.b16 %v443
    %v483 = vunpack.c.l.b16 %v444
    %v484 = vpack.c.b16 %v469, %v468
    %v485 = vpack.c.b16 %v471, %v470
    %v486 = vpack.c.b16 %v473, %v472
    %v487 = vpack.c.b16 %v475, %v474
    %v488 = vpack.c.b16 %v477, %v476
    %v489 = vpack.c.b16 %v479, %v478
    %v490 = vpack.c.b16 %v481, %v480
    %v491 = vpack.c.b16 %v483, %v482
    %500 = vmatprep.subr.bf16.mxu0 0
    %501 = vmatpush1.bf16.msra.mxu0 %v491
    %502 = vmatprep.subr.bf16.mxu0 0
    %503 = vmatpush1.bf16.msra.mxu0 %v490
    %504 = vmatprep.subr.bf16.mxu0 0
    %505 = vmatpush1.bf16.msra.mxu0 %v489
    %506 = vmatprep.subr.bf16.mxu0 0
    %507 = vmatpush1.bf16.msra.mxu0 %v488
    %508 = vmatprep.subr.bf16.mxu0 0
    %509 = vmatpush1.bf16.msra.mxu0 %v487
    %510 = vmatprep.subr.bf16.mxu0 0
    %511 = vmatpush1.bf16.msra.mxu0 %v486
    %512 = vmatprep.subr.bf16.mxu0 0
    %513 = vmatpush1.bf16.msra.mxu0 %v485
    %514 = vmatprep.subr.bf16.mxu0 0
    %515 = vmatpush1.bf16.msra.mxu0 %v484
    %516 = vmatprep.subr.bf16.mxu0 0
    %517 = vmatpush2.bf16.msra.mxu0 0
    %518 = vmatprep.subr.bf16.mxu0 0
    %519 = vmatpush2.bf16.msra.mxu0 0
    %520 = vmatprep.subr.bf16.mxu0 0
    %521 = vmatpush2.bf16.msra.mxu0 0
    %522 = vmatprep.subr.bf16.mxu0 0
    %523 = vmatpush2.bf16.msra.mxu0 0
    %524 = vmatprep.subr.bf16.mxu0 0
    %525 = vmatpush2.bf16.msra.mxu0 0
    %526 = vmatprep.subr.bf16.mxu0 0
    %527 = vmatpush2.bf16.msra.mxu0 0
    %528 = vmatprep.subr.bf16.mxu0 0
    %529 = vmatpush2.bf16.msra.mxu0 0
    %530 = vmatprep.subr.bf16.mxu0 0
    %531 = vmatpush2.bf16.msra.mxu0 0
    %532 = vmatprep.mubr.bf16.mxu0 0
    %533 = vmatmul.mubr.bf16.gmra.mxu0 %v428
    %v534 = vpop.f32.mrf.mxu0
    %v535 = vadd.f32 %v450, %v534
    %v536 = vpop.f32.mrf.mxu0
    %v537 = vpop.f32.mrf.mxu0
    %v538 = vpop.f32.mrf.mxu0
    %539 = vdwg.mxu0
    %540 = vst [vmem:[%s7] sm:$0xff] %v535
    // Predicated region
    $region42: #{decoder_forward.1} parent=1 // pred_check
      _
    $region43: #{decoder_forward.1} parent=1 // pred_check_branch
      %542 = sbr.rel (0) target = $region45
    $region44: #{decoder_forward.1} parent=1 // pred_region
      _
    $region45: #{decoder_forward.1} parent=1 // pred_fallthru
      _
    // Predicated region
    $region46: #{decoder_forward.1} parent=1 // pred_check
      _
    $region47: #{decoder_forward.1} parent=1 // pred_check_branch
      %544 = sbr.rel (0) target = $region49
    $region48: #{decoder_forward.1} parent=1 // pred_region
      _
    $region49: #{decoder_forward.1} parent=1 // pred_fallthru
      _
    %545 = vsyncpa [#allocation3], 1
    %546 = vsyncpa [#allocation5], 1

</llo_original>
